<compile_context>
chip_gen: v7x
topology: tpu7x:2x2x1
jax: 0.10.0
libtpu: 0.0.40
codegen_flags: <defaults>
</compile_context>

<pallas_src>
import jax
import jax.numpy as jnp
from jax.experimental import pallas as pl
from jax.experimental.pallas import tpu as pltpu


def _add_pos_kernel(x_ref, emb_ref, o_ref):
    # x_ref / o_ref: (BATCH_TILE, LANE_TILE) flattened (seq*d_model) tile
    # emb_ref:       (1, LANE_TILE)          positional embeddings, broadcast over batch
    o_ref[...] = x_ref[...] + emb_ref[...]


def _sublane_multiple(dtype) -> int:
    """Native second-to-last tile multiple: 8 for 4-byte, 16 for 2-byte, 32 for 1-byte."""
    itemsize = jnp.dtype(dtype).itemsize
    return max(8, 32 // max(itemsize, 1))


def _select_tiles(B, L, dtype, max_block_elems):
    """Pick (batch_tile, lane_tile) obeying the (sublane,128) rule and the block budget."""
    sub = _sublane_multiple(dtype)

    # Lane tile: a multiple of 128 dividing L (grown toward the budget), else full extent.
    if L % 128 == 0:
        lane_tile = 128
        while L % (lane_tile * 2) == 0 and sub * lane_tile * 2 <= max_block_elems:
            lane_tile *= 2
    else:
        lane_tile = L  # full-extent lane block (always legal)

    # Batch tile: largest multiple of `sub` that keeps the block under the budget.
    if B <= sub:
        batch_tile = B  # full extent (always legal)
    else:
        bt = (max_block_elems // max(lane_tile, 1)) // sub * sub
        bt = max(sub, bt)
        bt = min(bt, (B // sub) * sub)
        batch_tile = bt

    # Megacore (v7x, 2 TCs): guarantee >= 2 blocks along a parallel axis when non-trivial.
    if (pl.cdiv(L, lane_tile) * pl.cdiv(B, batch_tile) == 1
            and B * L >= 2 * sub * 128):
        if lane_tile == L and L % 256 == 0:
            lane_tile //= 2            # still a multiple of 128
        elif batch_tile >= 2 * sub:
            batch_tile = max(sub, (batch_tile // 2) // sub * sub)

    return batch_tile, lane_tile, sub


def positional_encoding(x, emb_table, *, batched=True, donate_x=False,
                        max_block_elems=1 << 20,      # elements per block (~4 MiB f32)
                        max_block_bytes=8 << 20,      # hard byte cap (v7x-safe)
                        min_kernel_elems=1 << 20):    # below this: plain XLA add
    """Adds positional embeddings to x, matching PositionalEncoding.forward.

    x:          [B, S, D] if batched else [S, D]
    emb_table:  [num_positions, D]  (rows 0..S-1 are used)
    """
    x3 = x if batched else x[None, ...]
    B, S, D = x3.shape
    num_positions, D_emb = emb_table.shape
    if D_emb != D:
        raise ValueError(f"d_model mismatch: x has {D}, emb_table has {D_emb}")
    if S > num_positions:
        raise ValueError(f"seq_len {S} exceeds num_positions {num_positions}")

    # torch-style type promotion (bf16 x + f32 emb -> f32 result).
    out_dtype = jnp.promote_types(x3.dtype, emb_table.dtype)
    itemsize = jnp.dtype(out_dtype).itemsize
    emb = emb_table[:S].astype(out_dtype)   # tiny static slice of the table
    L = S * D

    # Small-size bailout: launch overhead dwarfs the work; XLA fuses the add for free.
    if B * L < min_kernel_elems:
        out3 = x3.astype(out_dtype) + emb[None, :, :]
        return out3 if batched else out3[0]

    # Byte-aware block budget so double-buffered in+out+emb fits every chip's VMEM.
    budget = min(max_block_elems, max(max_block_bytes // itemsize, 8 * 128))
    batch_tile, lane_tile, _ = _select_tiles(B, L, out_dtype, budget)
    block_bytes = batch_tile * lane_tile * itemsize

    # Hard VMEM guard for the non-aligned fallback (lane_tile == full L and huge).
    if block_bytes > max_block_bytes:
        # TODO(synk): tile along S with a (batch_tile, S_tile, D) 3-D block instead of
        # bailing out when L is large and not a multiple of 128.
        out3 = x3.astype(out_dtype) + emb[None, :, :]
        return out3 if batched else out3[0]

    # Lane-dense views: contiguous reshapes, no extra HBM copy.
    x2 = x3.astype(out_dtype).reshape(B, L)
    emb2 = emb.reshape(1, L)

    n_lane = pl.cdiv(L, lane_tile)     # ragged last blocks are masked by Pallas
    n_batch = pl.cdiv(B, batch_tile)

    vmem_limit = int(min(64 << 20,
                         max(32 << 20,
                             4 * block_bytes + 2 * lane_tile * itemsize + (2 << 20))))

    out2 = pl.pallas_call(
        _add_pos_kernel,
        out_shape=jax.ShapeDtypeStruct((B, L), out_dtype),
        # Lane tiles outer, batch inner: emb block index is constant across the inner
        # (batch) axis, so each emb tile is fetched once per lane tile, not n_batch times.
        grid=(n_lane, n_batch),
        in_specs=[
            pl.BlockSpec((batch_tile, lane_tile), lambda l, b: (b, l)),
            pl.BlockSpec((1, lane_tile), lambda l, b: (0, l)),
        ],
        out_specs=pl.BlockSpec((batch_tile, lane_tile), lambda l, b: (b, l)),
        compiler_params=pltpu.CompilerParams(
            dimension_semantics=("parallel", "parallel"),
            vmem_limit_bytes=vmem_limit,
        ),
        input_output_aliases=({0: 0} if donate_x else {}),
    )(x2, emb2)

    out = out2.reshape(B, S, D)
    return out if batched else out[0]


if __name__ == "__main__":
    # Module config: d_model=32, num_positions=20, batched=True
    d_model = 32
    num_positions = 20
    batch = 2
    seq_len = 8

    key = jax.random.PRNGKey(0)
    kx, kemb = jax.random.split(key)
    emb_table = jax.random.normal(kemb, (num_positions, d_model), dtype=jnp.float32)
    x = jax.random.normal(kx, (batch, seq_len, d_model), dtype=jnp.float32)
    ref = x + emb_table[:seq_len][None, :, :]

    # --- tiny shape: automatic XLA bailout path (kernel launch would be pure overhead) ---
    out = jax.block_until_ready(positional_encoding(x, emb_table, batched=True))
    assert out.shape == x.shape
    assert jnp.allclose(out, ref, atol=1e-6), "mismatch (bailout path)"

    # --- same shape, kernel forced on (single full-extent lane-dense block) ---
    out_k = jax.block_until_ready(
        positional_encoding(x, emb_table, batched=True, min_kernel_elems=0))
    assert jnp.allclose(out_k, ref, atol=1e-6), "mismatch (kernel, batched)"

    # --- unbatched path ---
    out_unb = jax.block_until_ready(
        positional_encoding(x[0], emb_table, batched=False, min_kernel_elems=0))
    assert jnp.allclose(out_unb, x[0] + emb_table[:seq_len], atol=1e-6), \
        "mismatch (kernel, unbatched)"

    # --- multi-tile f32 path with ragged batch (B=20 not a multiple of 8) ---
    kx2, kemb2 = jax.random.split(jax.random.PRNGKey(0), 2)
    B2, S2, D2 = 20, 16, 32   # L=512 -> lane_tile=256, batch_tile=8, grid=(2, 3) ragged
    emb_table2 = jax.random.normal(kemb2, (num_positions, D2), dtype=jnp.float32)
    x2_in = jax.random.normal(kx2, (B2, S2, D2), dtype=jnp.float32)
    out2 = jax.block_until_ready(
        positional_encoding(x2_in, emb_table2, batched=True,
                            min_kernel_elems=0, max_block_elems=2048))
    assert jnp.allclose(out2, x2_in + emb_table2[:S2][None], atol=1e-6), \
        "mismatch (tiled / ragged batch)"

    # --- bf16 path: dtype-aware sublane multiple (16) keeps stores unmasked ---
    kx3, kemb3 = jax.random.split(jax.random.PRNGKey(0), 2)
    B3, S3, D3 = 32, 8, 32
    emb_table3 = jax.random.normal(kemb3, (num_positions, D3)).astype(jnp.bfloat16)
    x3_in = jax.random.normal(kx3, (B3, S3, D3)).astype(jnp.bfloat16)
    out3 = jax.block_until_ready(
        positional_encoding(x3_in, emb_table3, batched=True,
                            min_kernel_elems=0, max_block_elems=4096))
    assert out3.dtype == jnp.bfloat16
    assert jnp.allclose(out3.astype(jnp.float32),
                        (x3_in + emb_table3[:S3][None]).astype(jnp.float32),
                        atol=1e-2), "mismatch (bf16)"

    # --- mixed-dtype promotion parity (bf16 x + f32 emb -> f32 out, torch-style) ---
    x4_in = jax.random.normal(kx3, (16, seq_len, d_model)).astype(jnp.bfloat16)
    out4 = jax.block_until_ready(
        positional_encoding(x4_in, emb_table, batched=True, min_kernel_elems=0))
    assert out4.dtype == jnp.float32
    ref4 = x4_in.astype(jnp.float32) + emb_table[:seq_len][None]
    assert jnp.allclose(out4, ref4, atol=1e-5), "mismatch (mixed-dtype promotion)"

    print("KERNEL_OK")
</pallas_src>

<mosaic_0001>
module attributes {stable_mosaic.version = 11 : i64} {
  func.func @_add_pos_kernel(%arg0: i32, %arg1: i32, %arg2: memref<2x256xf32, #tpu.memory_space<vmem>>, %arg3: memref<1x256xf32, #tpu.memory_space<vmem>>, %arg4: memref<2x256xf32, #tpu.memory_space<vmem>>) attributes {dimension_semantics = [#tpu.dimension_semantics<parallel>, #tpu.dimension_semantics<parallel>], iteration_bounds = array<i64: 1, 1>, scalar_prefetch = 0 : i64, scratch_operands = 0 : i64, tpu.core_type = #tpu.core_type<tc>, window_params = [{transform_indices = @transform_0, window_bounds = array<i64: 2, 256>}, {transform_indices = @transform_1, window_bounds = array<i64: 1, 256>}, {transform_indices = @transform_2, window_bounds = array<i64: 2, 256>}]} {
    %c0 = arith.constant 0 : index
    %c0_0 = arith.constant 0 : index
    %0 = vector.load %arg2[%c0, %c0_0] : memref<2x256xf32, #tpu.memory_space<vmem>>, vector<2x256xf32>
    %c0_1 = arith.constant 0 : index
    %c0_2 = arith.constant 0 : index
    %1 = vector.load %arg3[%c0_1, %c0_2] : memref<1x256xf32, #tpu.memory_space<vmem>>, vector<1x256xf32>
    %2 = vector.broadcast %1 : vector<1x256xf32> to vector<2x256xf32>
    %3 = arith.addf %0, %2 : vector<2x256xf32>
    %c0_3 = arith.constant 0 : index
    %c0_4 = arith.constant 0 : index
    %4 = vector.load %arg4[%c0_3, %c0_4] : memref<2x256xf32, #tpu.memory_space<vmem>>, vector<2x256xf32>
    tpu.vector_store %arg4[%c0_3, %c0_4], %3 {strides = array<i32>} : memref<2x256xf32, #tpu.memory_space<vmem>>, vector<2x256xf32>,
    return
  }
  func.func @transform_0(%arg0: i32, %arg1: i32) -> (i32, i32) {
    %c0_i32 = arith.constant 0 : i32
    return %arg1, %arg0 : i32, i32
  }
  func.func @transform_1(%arg0: i32, %arg1: i32) -> (i32, i32) {
    %c0_i32 = arith.constant 0 : i32
    %c0_i32_0 = arith.constant 0 : i32
    return %c0_i32, %arg0 : i32, i32
  }
  func.func @transform_2(%arg0: i32, %arg1: i32) -> (i32, i32) {
    %c0_i32 = arith.constant 0 : i32
    return %arg1, %arg0 : i32, i32
  }
}

</mosaic_0001>

<llo_original>
// kernel: tpu_custom_call.1
$region0: #{tpu_custom_call.1}
  #allocation0 [shape = 'u32[]', space=smem, size = 0x4, offset = 0x4, fixed_abs, tag = 'smem constant byte address 0x4 - core index']
  #allocation1 [shape = 'u32[144,128]{1,0:T(1,128)}', space=vmem, size = 0x12000, scoped, tag = 'internal scratch']
  %s0 = inlined_call_operand.hbm [shape: f32[2,256], index: 0, kind: input, shape index: {}]
  %s1 = inlined_call_operand.vmem [shape: f32[1,256], index: 1, kind: input, shape index: {}]
  %s2 = inlined_call_operand.hbm [shape: f32[2,256], index: 2, kind: output, shape index: {}]
  %s3 = sld [smem:[#allocation0]]
  $region22: #{tpu_custom_call.1} parent=0
    _
  %s5 = ssub.s32 1, %s3
  %s6 = scalar_select 0, %s5, %s3
  $region1: #{tpu_custom_call.1} parent=0
    #allocation2 [shape = 'u8[2048]{0}', space=vmem, size = 0x800, scoped, tag = 'input window, operand 0, single buffered']
    #allocation3 [shape = 's32[1]{0}', space=sflag, size = 0x4, scoped, tag = 'scoped memory for tpu_custom_call.1']
    #allocation4 [shape = 's32[1]{0}', space=sflag, size = 0x4, scoped, tag = 'scoped memory for tpu_custom_call.1']
    #allocation5 [shape = 'u8[2048]{0}', space=vmem, size = 0x800, scoped, tag = 'output window, operand 0, single buffered']
    %7 = vsyncpa [#allocation3], 0
    %8 = vsyncpa [#allocation4], 0
    // Predicated region
    $region2: #{tpu_custom_call.1} parent=1 // pred_check
      _
    $region3: #{tpu_custom_call.1} parent=1 // pred_check_branch
      %10 = sbr.rel (0) target = $region5
    $region4: #{tpu_custom_call.1} parent=1 // pred_region
      %s12 = ssub.s32 64, 64
      %13 = vsyncadd [#allocation3], %s12
      %s15 = sshll.u32 [#allocation2], 4
      %s16 = int_to_ptr.vmem [resolvable:$true] %s15
      %18 = dma.hbm_to_vmem [thread:$0]  %s0, 64, %s16, [#allocation3]
    $region5: #{tpu_custom_call.1} parent=1 // pred_fallthru
      _
    // Predicated region
    $region6: #{tpu_custom_call.1} parent=1 // pred_check
      _
    $region7: #{tpu_custom_call.1} parent=1 // pred_check_branch
      %20 = sbr.rel (0) target = $region9
    $region8: #{tpu_custom_call.1} parent=1 // pred_region
      _
    $region9: #{tpu_custom_call.1} parent=1 // pred_fallthru
      _
    // Predicated region
    $region10: #{tpu_custom_call.1} parent=1 // pred_check
      _
    $region11: #{tpu_custom_call.1} parent=1 // pred_check_branch
      %22 = sbr.rel (0) target = $region13
    $region12: #{tpu_custom_call.1} parent=1 // pred_region
      %23 = dma.done [#allocation3], 64
    $region13: #{tpu_custom_call.1} parent=1 // pred_fallthru
      _
    %v24 = vld [vmem:[#allocation2] sm:$0xf]
    %v25 = vld [vmem:[%s1] sm:$0x3]
    %v27 = vlaneseq
    %v28 = vshrl.u32 %v27, 7
    %v29 = vsub.s32 0, %v28
    %v30 = vrot.slane %v25, %v29
    %v31 = vlaneseq
    %v32 = vshrl.u32 %v31, 7
    %v33 = vsub.s32 1, %v32
    %v34 = vrot.slane %v25, %v33
    %v35 = vcombine.low %v30, %v34
    %v37 = vunpack.c.l.s4 1983009808
    %v38 = vunpack.c.0.s8 %v37
    %v39 = vlaneseq
    %v40 = vshrl.u32 %v39, 7
    %v41 = vsub.s32 %v38, %v40
    %v42 = vrot.slane %v35, %v41
    %v44 = vadd.f32 %v24, %v42
    %45 = vst [vmem:[#allocation5] sm:$0xf] %v44
    // Predicated region
    $region14: #{tpu_custom_call.1} parent=1 // pred_check
      _
    $region15: #{tpu_custom_call.1} parent=1 // pred_check_branch
      %47 = sbr.rel (0) target = $region17
    $region16: #{tpu_custom_call.1} parent=1 // pred_region
      %s49 = ssub.s32 64, 64
      %50 = vsyncadd [#allocation4], %s49
      %s52 = sshll.u32 [#allocation5], 4
      %s53 = int_to_ptr.vmem [resolvable:$true] %s52
      %55 = dma.vmem_to_hbm [thread:$0]  %s53, 64, %s2, [#allocation4]
    $region17: #{tpu_custom_call.1} parent=1 // pred_fallthru
      _
    // Predicated region
    $region18: #{tpu_custom_call.1} parent=1 // pred_check
      _
    $region19: #{tpu_custom_call.1} parent=1 // pred_check_branch
      %57 = sbr.rel (0) target = $region21
    $region20: #{tpu_custom_call.1} parent=1 // pred_region
      %58 = dma.done [#allocation4], 64
    $region21: #{tpu_custom_call.1} parent=1 // pred_fallthru
      _
    %59 = vsyncpa [#allocation3], 1
    %60 = vsyncpa [#allocation4], 1

</llo_original>
